<compile_context>
chip_gen: v7x
topology: tpu7x:2x2x1
jax: 0.10.0
libtpu: 0.0.40
codegen_flags: <defaults>
</compile_context>

<pallas_src>
import jax
import jax.numpy as jnp
from jax.experimental import pallas as pl
from jax.experimental.pallas import tpu as pltpu


def _hswish_kernel(x_ref, o_ref):
    # hswish(x) = x * relu6(x + 3) / 6, computed with f32 intermediates.
    x = x_ref[...].astype(jnp.float32)
    hsig = jnp.clip(x + 3.0, 0.0, 6.0) * (1.0 / 6.0)
    o_ref[...] = (x * hsig).astype(o_ref.dtype)


def _hswish_jnp_f32(x):
    """Pure-jnp hard swish with f32 intermediates, cast back to x.dtype."""
    xf = x.astype(jnp.float32)
    return (xf * (jnp.clip(xf + 3.0, 0.0, 6.0) * (1.0 / 6.0))).astype(x.dtype)


def hswish(
    x: jax.Array,
    *,
    target_block_bytes: int = 8 * 1024 * 1024,
    min_pallas_bytes: int = 512 * 1024,
) -> jax.Array:
    """Elementwise hard-swish. Accepts any shape; large tensors use a Pallas kernel."""
    orig_shape = x.shape
    dtype = x.dtype
    total = x.size
    if total == 0:
        return x
    if not jnp.issubdtype(dtype, jnp.floating):
        # TODO(synk): integer inputs follow jnp promotion (PyTorch also promotes via /6).
        return x * (jnp.clip(x + 3, 0, 6) / 6)

    itemsize = jnp.dtype(dtype).itemsize

    # Small-tensor bypass: fixed pallas_call overhead dominates and the jnp form
    # stays fusable with the surrounding graph.
    if total * itemsize < min_pallas_bytes:
        return _hswish_jnp_f32(x)

    lane = 128
    sub = max(8, 32 // itemsize)  # packed sublanes per vreg: 8 f32 / 16 bf16 / 32 int8

    # Widest lane-dense last dim that divides total (no data movement needed).
    width = None
    for w in (1024, 512, 256, 128):
        if total % w == 0:
            width = w
            break

    x_flat = jnp.reshape(x, (-1,))
    tail_out = None
    if width is None:
        # Ragged: kernel on the 128-aligned prefix, <128-element tail in jnp.
        width = lane
        aligned = (total // lane) * lane
        if aligned == 0:
            return _hswish_jnp_f32(x)
        tail_out = _hswish_jnp_f32(x_flat[aligned:])
        x_flat = x_flat[:aligned]

    n = x_flat.size
    rows = n // width
    x2d = jnp.reshape(x_flat, (rows, width))

    # Tile rows: ~target_block_bytes per buffer, rounded to the sublane packing.
    elems_per_block = max(sub * width, target_block_bytes // itemsize)
    tr = max(sub, (elems_per_block // width) // sub * sub)

    n_blocks = pl.cdiv(rows, tr)
    if n_blocks == 1 and rows >= 2 * sub:
        # Ensure >= 2 grid steps so both v7x TensorCores engage.
        n_blocks = 2
    if 2 <= n_blocks <= 7:
        # Balance block sizes and keep an even block count for the 2-TC split
        # (avoids e.g. a 2048-row block paired with a 16-row trailing block).
        nb = n_blocks + (n_blocks & 1)
        tr = pl.cdiv(pl.cdiv(rows, nb), sub) * sub
    elif n_blocks == 1:
        tr = rows  # single block equal to the full (small) row extent
    grid = (pl.cdiv(rows, tr),)

    out2d = pl.pallas_call(
        _hswish_kernel,
        out_shape=jax.ShapeDtypeStruct((rows, width), dtype),
        grid_spec=pl.GridSpec(
            grid=grid,
            in_specs=[pl.BlockSpec((tr, width), lambda i: (i, 0))],
            out_specs=pl.BlockSpec((tr, width), lambda i: (i, 0)),
        ),
        compiler_params=pltpu.CompilerParams(
            dimension_semantics=("parallel",),
            vmem_limit_bytes=48 * 1024 * 1024,  # <= v7x's 64 MiB physical VMEM
        ),
        cost_estimate=pl.CostEstimate(
            flops=7 * n,
            transcendentals=0,
            bytes_accessed=2 * n * itemsize,
        ),
    )(x2d)

    out_flat = jnp.reshape(out2d, (-1,))
    if tail_out is not None:
        out_flat = jnp.concatenate([out_flat, tail_out])
    return jnp.reshape(out_flat, orig_shape)


if __name__ == "__main__":
    key = jax.random.PRNGKey(0)

    # Primary input consistent with the module (activation on conv feature maps),
    # forced through the Pallas kernel path so the kernel is exercised.
    x = jax.random.normal(key, (2, 4, 16, 16), dtype=jnp.float32) * 4.0
    y = jax.block_until_ready(hswish(x, min_pallas_bytes=0))
    y_ref = _hswish_jnp_f32(x)
    assert y.shape == x.shape and y.dtype == x.dtype
    assert jnp.allclose(y, y_ref, atol=1e-6, rtol=1e-6), "mismatch vs reference (kernel)"

    # Default path on the same tiny input hits the small-tensor jnp bypass.
    y_b = jax.block_until_ready(hswish(x))
    assert jnp.allclose(y_b, y_ref, atol=1e-6, rtol=1e-6), "mismatch vs reference (bypass)"

    # Medium tensor (1 MiB) -> Pallas path with a balanced multi-block grid.
    x3 = jax.random.normal(jax.random.PRNGKey(2), (2, 32, 64, 64), dtype=jnp.float32) * 4.0
    y3 = jax.block_until_ready(hswish(x3))
    assert jnp.allclose(y3, _hswish_jnp_f32(x3), atol=1e-6, rtol=1e-6), "mismatch (medium)"

    # Ragged element count -> aligned-prefix kernel + jnp tail (no pad copy).
    x2 = jax.random.normal(jax.random.PRNGKey(1), (3, 5, 7, 9), dtype=jnp.float32) * 4.0
    y2 = jax.block_until_ready(hswish(x2, min_pallas_bytes=0))
    assert jnp.allclose(y2, _hswish_jnp_f32(x2), atol=1e-6, rtol=1e-6), "mismatch (ragged)"

    print("KERNEL_OK")
</pallas_src>

<mosaic_0001>
module attributes {stable_mosaic.version = 11 : i64} {
  func.func @_hswish_kernel(%arg0: i32, %arg1: memref<2x1024xf32, #tpu.memory_space<vmem>>, %arg2: memref<2x1024xf32, #tpu.memory_space<vmem>>) attributes {dimension_semantics = [#tpu.dimension_semantics<parallel>], iteration_bounds = array<i64: 1>, scalar_prefetch = 0 : i64, scratch_operands = 0 : i64, tpu.core_type = #tpu.core_type<tc>, window_params = [{transform_indices = @transform_0, window_bounds = array<i64: 2, 1024>}, {transform_indices = @transform_1, window_bounds = array<i64: 2, 1024>}]} {
    %c0 = arith.constant 0 : index
    %c0_0 = arith.constant 0 : index
    %0 = vector.load %arg1[%c0, %c0_0] : memref<2x1024xf32, #tpu.memory_space<vmem>>, vector<2x1024xf32>
    %cst = arith.constant 3.000000e+00 : f32
    %1 = vector.broadcast %cst : f32 to vector<2x1024xf32>
    %2 = arith.addf %0, %1 : vector<2x1024xf32>
    %cst_1 = arith.constant 0.000000e+00 : f32
    %cst_2 = arith.constant 6.000000e+00 : f32
    %3 = vector.broadcast %cst_1 : f32 to vector<2x1024xf32>
    %4 = arith.maximumf %3, %2 : vector<2x1024xf32>
    %5 = vector.broadcast %cst_2 : f32 to vector<2x1024xf32>
    %6 = arith.minimumf %5, %4 : vector<2x1024xf32>
    %cst_3 = arith.constant 0.166666672 : f32
    %7 = vector.broadcast %cst_3 : f32 to vector<2x1024xf32>
    %8 = arith.mulf %6, %7 : vector<2x1024xf32>
    %9 = arith.mulf %0, %8 : vector<2x1024xf32>
    %c0_4 = arith.constant 0 : index
    %c0_5 = arith.constant 0 : index
    %10 = vector.load %arg2[%c0_4, %c0_5] : memref<2x1024xf32, #tpu.memory_space<vmem>>, vector<2x1024xf32>
    tpu.vector_store %arg2[%c0_4, %c0_5], %9 {strides = array<i32>} : memref<2x1024xf32, #tpu.memory_space<vmem>>, vector<2x1024xf32>,
    return
  }
  func.func @transform_0(%arg0: i32) -> (i32, i32) {
    %c0_i32 = arith.constant 0 : i32
    %c0_i32_0 = arith.constant 0 : i32
    return %arg0, %c0_i32 : i32, i32
  }
  func.func @transform_1(%arg0: i32) -> (i32, i32) {
    %c0_i32 = arith.constant 0 : i32
    %c0_i32_0 = arith.constant 0 : i32
    return %arg0, %c0_i32 : i32, i32
  }
}

</mosaic_0001>

<llo_original>
// kernel: tpu_custom_call.1
$region0: #{tpu_custom_call.1}
  #allocation0 [shape = 'u32[]', space=smem, size = 0x4, offset = 0x4, fixed_abs, tag = 'smem constant byte address 0x4 - core index']
  #allocation1 [shape = 'u32[144,128]{1,0:T(1,128)}', space=vmem, size = 0x12000, scoped, tag = 'internal scratch']
  %s0 = inlined_call_operand.hbm [shape: f32[2,1024], index: 0, kind: input, shape index: {}]
  %s1 = inlined_call_operand.hbm [shape: f32[2,1024], index: 1, kind: output, shape index: {}]
  %s2 = sld [smem:[#allocation0]]
  $region18: #{tpu_custom_call.1} parent=0
    _
  %s4 = ssub.s32 1, %s2
  %s5 = scalar_select 0, %s4, %s2
  $region1: #{tpu_custom_call.1} parent=0
    #allocation2 [shape = 'u8[8192]{0}', space=vmem, size = 0x2000, scoped, tag = 'input window, operand 0, single buffered']
    #allocation3 [shape = 's32[1]{0}', space=sflag, size = 0x4, scoped, tag = 'scoped memory for tpu_custom_call.1']
    #allocation4 [shape = 's32[1]{0}', space=sflag, size = 0x4, scoped, tag = 'scoped memory for tpu_custom_call.1']
    #allocation5 [shape = 'u8[8192]{0}', space=vmem, size = 0x2000, scoped, tag = 'output window, operand 0, single buffered']
    %6 = vsyncpa [#allocation3], 0
    %7 = vsyncpa [#allocation4], 0
    // Predicated region
    $region2: #{tpu_custom_call.1} parent=1 // pred_check
      _
    $region3: #{tpu_custom_call.1} parent=1 // pred_check_branch
      %9 = sbr.rel (0) target = $region5
    $region4: #{tpu_custom_call.1} parent=1 // pred_region
      %s11 = ssub.s32 256, 256
      %12 = vsyncadd [#allocation3], %s11
      %s14 = sshll.u32 [#allocation2], 4
      %s15 = int_to_ptr.vmem [resolvable:$true] %s14
      %17 = dma.hbm_to_vmem [thread:$0]  %s0, 256, %s15, [#allocation3]
    $region5: #{tpu_custom_call.1} parent=1 // pred_fallthru
      _
    // Predicated region
    $region6: #{tpu_custom_call.1} parent=1 // pred_check
      _
    $region7: #{tpu_custom_call.1} parent=1 // pred_check_branch
      %19 = sbr.rel (0) target = $region9
    $region8: #{tpu_custom_call.1} parent=1 // pred_region
      %20 = dma.done [#allocation3], 256
    $region9: #{tpu_custom_call.1} parent=1 // pred_fallthru
      _
    %v21 = vld [vmem:[#allocation2] sm:$0xff]
    %v22 = vld [vmem:[#allocation2 + $0x8] sm:$0xff]
    %v23 = vadd.f32 %v21, 3.0
    %v24 = vadd.f32 %v22, 3.0
    %v25 = vmax.f32 %v23, 0.0
    %v26 = vmax.f32 %v24, 0.0
    %v27 = vmin.f32 %v25, 6.0
    %v28 = vmin.f32 %v26, 6.0
    %v29 = vmul.f32 %v27, 0.16666667
    %v30 = vmul.f32 %v28, 0.16666667
    %v31 = vmul.f32 %v21, %v29
    %v32 = vmul.f32 %v22, %v30
    %33 = vst [vmem:[#allocation5] sm:$0xff] %v31
    %34 = vst [vmem:[#allocation5 + $0x8] sm:$0xff] %v32
    // Predicated region
    $region10: #{tpu_custom_call.1} parent=1 // pred_check
      _
    $region11: #{tpu_custom_call.1} parent=1 // pred_check_branch
      %36 = sbr.rel (0) target = $region13
    $region12: #{tpu_custom_call.1} parent=1 // pred_region
      %s38 = ssub.s32 256, 256
      %39 = vsyncadd [#allocation4], %s38
      %s41 = sshll.u32 [#allocation5], 4
      %s42 = int_to_ptr.vmem [resolvable:$true] %s41
      %44 = dma.vmem_to_hbm [thread:$0]  %s42, 256, %s1, [#allocation4]
    $region13: #{tpu_custom_call.1} parent=1 // pred_fallthru
      _
    // Predicated region
    $region14: #{tpu_custom_call.1} parent=1 // pred_check
      _
    $region15: #{tpu_custom_call.1} parent=1 // pred_check_branch
      %46 = sbr.rel (0) target = $region17
    $region16: #{tpu_custom_call.1} parent=1 // pred_region
      %47 = dma.done [#allocation4], 256
    $region17: #{tpu_custom_call.1} parent=1 // pred_fallthru
      _
    %48 = vsyncpa [#allocation3], 1
    %49 = vsyncpa [#allocation4], 1

</llo_original>
